<compile_context>
chip_gen: v5e
topology: v5e:2x2
jax: 0.10.0
libtpu: 0.0.40
codegen_flags: <defaults>
</compile_context>

<pallas_src>
import jax
import jax.numpy as jnp
from jax.experimental import pallas as pl
from jax.experimental.pallas import tpu as pltpu


def _posenc_kernel(inv_freq_ref, phase_ref, o_ref):
    tile_p, hidden = o_ref.shape
    row0 = pl.program_id(0) * tile_p
    # Global position index for every element of this tile (VALU only).
    pos = (jax.lax.broadcasted_iota(jnp.int32, (tile_p, hidden), 0) + row0).astype(
        jnp.float32
    )
    # angle = pos / 10000**(2i/hidden)  (+ pi/2 on odd columns so sin -> cos)
    angle = pos * inv_freq_ref[...] + phase_ref[...]
    o_ref[...] = jnp.sin(angle)  # single EUP op per element


def _choose_tile_p(seq_len: int, hidden_size: int) -> int:
    """Largest row tile (multiple of 8) whose f32 output block stays ~8 MiB."""
    row_bytes = hidden_size * 4
    budget = 8 * 1024 * 1024  # per buffer; double-buffered output -> <=16 MiB
    t = budget // max(row_bytes, 1)
    t = min(t, 1024)                      # cap: amortization saturates
    t = max(8, (t // 8) * 8)              # keep (8, 128)-friendly sublane count
    seq_padded = ((seq_len + 7) // 8) * 8
    return min(t, seq_padded)


def positional_encoding(seq_len: int, hidden_size: int):
    """Returns the (1, seq_len, hidden_size) sinusoidal encoding (float32)."""
    d = jnp.arange(hidden_size, dtype=jnp.int32)
    two_i = (d & ~1).astype(jnp.float32)                     # 0,0,2,2,4,4,...
    inv_freq = (1.0 / (10000.0 ** (two_i / jnp.float32(hidden_size)))).reshape(
        1, hidden_size
    ).astype(jnp.float32)
    phase = ((d & 1).astype(jnp.float32) * (jnp.pi / 2.0)).reshape(1, hidden_size)

    tile_p = _choose_tile_p(seq_len, hidden_size)
    grid = (pl.cdiv(seq_len, tile_p),)

    enc = pl.pallas_call(
        _posenc_kernel,
        out_shape=jax.ShapeDtypeStruct((seq_len, hidden_size), jnp.float32),
        grid=grid,
        in_specs=[
            pl.BlockSpec((1, hidden_size), lambda i: (0, 0)),  # inv_freq row
            pl.BlockSpec((1, hidden_size), lambda i: (0, 0)),  # phase row
        ],
        out_specs=pl.BlockSpec((tile_p, hidden_size), lambda i: (i, 0)),
        compiler_params=pltpu.CompilerParams(dimension_semantics=("parallel",)),
    )(inv_freq, phase)
    return enc[None, :, :]  # leading broadcast dim of size 1


class PositionalEncodingPallas:
    """Mirror of the PyTorch module: the full (1, max_len, hidden) table is
    built once at construction (via the Pallas kernel); forward just slices
    encoding[:, :x.shape[1], :]."""

    def __init__(self, hidden_size: int, max_len: int):
        self.hidden_size = hidden_size
        self.max_len = max_len
        self.encoding = jax.block_until_ready(
            positional_encoding(max_len, hidden_size)
        )

    def __call__(self, x):
        seq_len = x.shape[1]
        assert seq_len <= self.max_len
        return self.encoding[:, :seq_len, :]


def _reference(seq_len, hidden_size):
    pos = jnp.arange(seq_len, dtype=jnp.float32)[:, None]
    _2i = jnp.arange(0, hidden_size, 2, dtype=jnp.float32)
    enc = jnp.zeros((seq_len, hidden_size), jnp.float32)
    enc = enc.at[:, 0::2].set(jnp.sin(pos / 10000 ** (_2i / hidden_size)))
    enc = enc.at[:, 1::2].set(jnp.cos(pos / 10000 ** (_2i / hidden_size)))
    return enc[None]


if __name__ == "__main__":
    batch, seq, hidden, max_len = 2, 8, 32, 64
    key = jax.random.PRNGKey(0)
    x = jax.random.normal(key, (batch, seq, hidden), dtype=jnp.float32)

    module = PositionalEncodingPallas(hidden_size=hidden, max_len=max_len)
    out = module(x)
    out = jax.block_until_ready(out)

    ref = _reference(seq, hidden)
    assert out.shape == (1, seq, hidden), out.shape
    assert jnp.allclose(out, ref, atol=1e-5, rtol=1e-5), "mismatch vs reference"

    # Also verify the full cached table against the reference at max_len.
    full_ref = _reference(max_len, hidden)
    assert jnp.allclose(module.encoding, full_ref, atol=1e-5, rtol=1e-5)

    print("KERNEL_OK")
</pallas_src>

<mosaic_0001>
module attributes {stable_mosaic.version = 11 : i64} {
  func.func @_posenc_kernel(%arg0: i32, %arg1: memref<1x32xf32, #tpu.memory_space<vmem>>, %arg2: memref<1x32xf32, #tpu.memory_space<vmem>>, %arg3: memref<64x32xf32, #tpu.memory_space<vmem>>) attributes {dimension_semantics = [#tpu.dimension_semantics<parallel>], iteration_bounds = array<i64: 1>, scalar_prefetch = 0 : i64, scratch_operands = 0 : i64, tpu.core_type = #tpu.core_type<tc>, window_params = [{pipeline_mode = #tpu.pipeline_mode<synchronous>, transform_indices = @transform_0, window_bounds = array<i64: 1, 32>}, {pipeline_mode = #tpu.pipeline_mode<synchronous>, transform_indices = @transform_1, window_bounds = array<i64: 1, 32>}, {transform_indices = @transform_2, window_bounds = array<i64: 64, 32>}]} {
    %c64_i32 = arith.constant 64 : i32
    %0 = arith.muli %arg0, %c64_i32 : i32
    %1 = tpu.iota {dimensions = array<i32: 0>} : vector<64x32xi32>
    %2 = vector.broadcast %0 : i32 to vector<64x32xi32>
    %3 = arith.addi %1, %2 : vector<64x32xi32>
    %4 = arith.sitofp %3 : vector<64x32xi32> to vector<64x32xf32>
    %c0 = arith.constant 0 : index
    %c0_0 = arith.constant 0 : index
    %5 = vector.load %arg1[%c0, %c0_0] : memref<1x32xf32, #tpu.memory_space<vmem>>, vector<1x32xf32>
    %6 = vector.broadcast %5 : vector<1x32xf32> to vector<64x32xf32>
    %7 = arith.mulf %4, %6 : vector<64x32xf32>
    %c0_1 = arith.constant 0 : index
    %c0_2 = arith.constant 0 : index
    %8 = vector.load %arg2[%c0_1, %c0_2] : memref<1x32xf32, #tpu.memory_space<vmem>>, vector<1x32xf32>
    %9 = vector.broadcast %8 : vector<1x32xf32> to vector<64x32xf32>
    %10 = arith.addf %7, %9 : vector<64x32xf32>
    %11 = math.sin %10 : vector<64x32xf32>
    %c0_3 = arith.constant 0 : index
    %c0_4 = arith.constant 0 : index
    %12 = vector.load %arg3[%c0_3, %c0_4] : memref<64x32xf32, #tpu.memory_space<vmem>>, vector<64x32xf32>
    tpu.vector_store %arg3[%c0_3, %c0_4], %11 {strides = array<i32>} : memref<64x32xf32, #tpu.memory_space<vmem>>, vector<64x32xf32>,
    return
  }
  func.func @transform_0(%arg0: i32) -> (i32, i32) {
    %c0_i32 = arith.constant 0 : i32
    %c0_i32_0 = arith.constant 0 : i32
    %c0_i32_1 = arith.constant 0 : i32
    return %c0_i32, %c0_i32_0 : i32, i32
  }
  func.func @transform_1(%arg0: i32) -> (i32, i32) {
    %c0_i32 = arith.constant 0 : i32
    %c0_i32_0 = arith.constant 0 : i32
    %c0_i32_1 = arith.constant 0 : i32
    return %c0_i32, %c0_i32_0 : i32, i32
  }
  func.func @transform_2(%arg0: i32) -> (i32, i32) {
    %c0_i32 = arith.constant 0 : i32
    %c0_i32_0 = arith.constant 0 : i32
    return %arg0, %c0_i32 : i32, i32
  }
}

</mosaic_0001>

<llo_original>
// kernel: tpu_custom_call.1
$region0: #{tpu_custom_call.1}
  #allocation0 [shape = 'u32[]', space=smem, size = 0x4, offset = 0x4, fixed_abs, tag = 'smem constant byte address 0x4 - core index']
  #allocation1 [shape = 'u32[72,128]{1,0:T(1,128)}', space=vmem, size = 0x9000, scoped, tag = 'internal scratch']
  %s0 = inlined_call_operand.hbm [shape: f32[1,32], index: 0, kind: input, shape index: {}]
  %s1 = inlined_call_operand.hbm [shape: f32[1,32], index: 1, kind: input, shape index: {}]
  %s2 = inlined_call_operand.vmem [shape: f32[64,32], index: 2, kind: output, shape index: {}]
  %s3 = sld [smem:[#allocation0]]
  $region26: #{tpu_custom_call.1} parent=0
    _
  %s5 = ssub.s32 1, %s3
  %s6 = scalar_select 0, %s5, %s3
  $region1: #{tpu_custom_call.1} parent=0
    #allocation2 [shape = 'u8[512]{0}', space=vmem, size = 0x400, scoped, tag = 'input window, operand 0, single buffered']
    #allocation3 [shape = 's32[1]{0}', space=sflag, size = 0x4, scoped, tag = 'scoped memory for tpu_custom_call.1']
    #allocation4 [shape = 'u8[512]{0}', space=vmem, size = 0x400, scoped, tag = 'input window, operand 1, single buffered']
    #allocation5 [shape = 's32[1]{0}', space=sflag, size = 0x4, scoped, tag = 'scoped memory for tpu_custom_call.1']
    %7 = vsyncpa [#allocation3], 0
    %8 = vsyncpa [#allocation5], 0
    // Predicated region
    $region2: #{tpu_custom_call.1} parent=1 // pred_check
      _
    $region3: #{tpu_custom_call.1} parent=1 // pred_check_branch
      %10 = sbr.rel (0) target = $region5
    $region4: #{tpu_custom_call.1} parent=1 // pred_region
      %12 = vsyncadd [#allocation3], 0
      %s14 = sshll.u32 %s0, 4
      %s15 = int_to_ptr.hbm [resolvable:$true] %s14
      %s16 = sshll.u32 [#allocation2], 4
      %s17 = int_to_ptr.vmem [resolvable:$true] %s16
      %19 = dma.hbm_to_vmem [thread:$0]  %s15, 16, %s17, [#allocation3]
    $region5: #{tpu_custom_call.1} parent=1 // pred_fallthru
      _
    // Predicated region
    $region6: #{tpu_custom_call.1} parent=1 // pred_check
      _
    $region7: #{tpu_custom_call.1} parent=1 // pred_check_branch
      %21 = sbr.rel (0) target = $region9
    $region8: #{tpu_custom_call.1} parent=1 // pred_region
      %23 = vsyncadd [#allocation5], 0
      %s25 = sshll.u32 %s1, 4
      %s26 = int_to_ptr.hbm [resolvable:$true] %s25
      %s27 = sshll.u32 [#allocation4], 4
      %s28 = int_to_ptr.vmem [resolvable:$true] %s27
      %30 = dma.hbm_to_vmem [thread:$0]  %s26, 16, %s28, [#allocation5]
    $region9: #{tpu_custom_call.1} parent=1 // pred_fallthru
      _
    // Predicated region
    $region10: #{tpu_custom_call.1} parent=1 // pred_check
      _
    $region11: #{tpu_custom_call.1} parent=1 // pred_check_branch
      %32 = sbr.rel (0) target = $region13
    $region12: #{tpu_custom_call.1} parent=1 // pred_region
      %34 = dma.done [#allocation3], 16
    $region13: #{tpu_custom_call.1} parent=1 // pred_fallthru
      _
    // Predicated region
    $region14: #{tpu_custom_call.1} parent=1 // pred_check
      _
    $region15: #{tpu_custom_call.1} parent=1 // pred_check_branch
      %36 = sbr.rel (0) target = $region17
    $region16: #{tpu_custom_call.1} parent=1 // pred_region
      %38 = dma.done [#allocation5], 16
    $region17: #{tpu_custom_call.1} parent=1 // pred_fallthru
      _
    %s39 = smul.u32 0, 64
    %v40 = vlaneseq
    %v41 = vshrl.u32 %v40, 7
    %v42 = vadd.s32 %v41, 8
    %v43 = vadd.s32 %v41, 16
    %v44 = vadd.s32 %v41, 24
    %v45 = vadd.s32 %v41, 32
    %v46 = vadd.s32 %v41, 40
    %v47 = vadd.s32 %v41, 48
    %v48 = vadd.s32 %v41, 56
    %v49 = vstv %s39
    %v50 = vadd.s32 %v41, %v49
    %v51 = vadd.s32 %v42, %v49
    %v52 = vadd.s32 %v43, %v49
    %v53 = vadd.s32 %v44, %v49
    %v54 = vadd.s32 %v45, %v49
    %v55 = vadd.s32 %v46, %v49
    %v56 = vadd.s32 %v47, %v49
    %v57 = vadd.s32 %v48, %v49
    %v58 = vcvt.s32.f32 %v50
    %v59 = vcvt.s32.f32 %v51
    %v60 = vcvt.s32.f32 %v52
    %v61 = vcvt.s32.f32 %v53
    %v62 = vcvt.s32.f32 %v54
    %v63 = vcvt.s32.f32 %v55
    %v64 = vcvt.s32.f32 %v56
    %v65 = vcvt.s32.f32 %v57
    %v66 = vld [vmem:[#allocation2] sm:$0x1]
    %v68 = vperm.slane %v66, 0
    %v70 = vmul.f32 %v58, %v68
    %v71 = vmul.f32 %v59, %v68
    %v72 = vmul.f32 %v60, %v68
    %v73 = vmul.f32 %v61, %v68
    %v74 = vmul.f32 %v62, %v68
    %v75 = vmul.f32 %v63, %v68
    %v76 = vmul.f32 %v64, %v68
    %v77 = vmul.f32 %v65, %v68
    %v78 = vld [vmem:[#allocation4] sm:$0x1]
    %v80 = vperm.slane %v78, 0
    %v82 = vadd.f32 %v70, %v80
    %v83 = vadd.f32 %v71, %v80
    %v84 = vadd.f32 %v72, %v80
    %v85 = vadd.f32 %v73, %v80
    %v86 = vadd.f32 %v74, %v80
    %v87 = vadd.f32 %v75, %v80
    %v88 = vadd.f32 %v76, %v80
    %v89 = vadd.f32 %v77, %v80
    %v90 = vand.u32 2147483647, %v82
    %vm91 = vcmp.le.f32.partialorder %v90, 0.7853982
    %vm92 = vcmp.lt.s32.totalorder %v82, 0
    %v93 = vand.u32 %v82, 2139095040
    %v94 = vshrl.u32 %v93, 23
    %v95 = vsub.s32 %v94, 127
    %v96 = vand.u32 2147483647, %v82
    %v97 = vand.u32 %v96, 8388607
    %v98 = vor.u32 %v97, 8388608
    %v99 = vsub.s32 0, %v98
    %v100 = vadd.s32 %v95, 1
    %vm101 = vcmp.gt.s32.totalorder %v100, 0
    %v102 = vsel %vm101, %v100, 0
    %v103 = vshrl.u32 %v102, 5
    %v104 = vand.u32 %v102, 31
    %v105 = vsub.s32 32, %v104
    %v106 = vshrl.u32 683565275, %v105
    %v107 = vshll.u32 683565275, %v104
    %v108 = vshrl.u32 2475754826, %v105
    %v109 = vor.u32 %v107, %v108
    %v110 = vshll.u32 2475754826, %v104
    %v111 = vshrl.u32 2131351028, %v105
    %v112 = vor.u32 %v110, %v111
    %v113 = vshll.u32 2131351028, %v104
    %v114 = vshrl.u32 2102212464, %v105
    %v115 = vor.u32 %v113, %v114
    %v116 = vshll.u32 2102212464, %v104
    %v117 = vshrl.u32 920167782, %v105
    %v118 = vor.u32 %v116, %v117
    %v119 = vshll.u32 920167782, %v104
    %v120 = vshrl.u32 1326507024, %v105
    %v121 = vor.u32 %v119, %v120
    %vm122 = vcmp.lt.s32.totalorder %v103, 1
    %vm123 = vcmp.lt.s32.totalorder %v103, 2
    %vm124 = vcmp.lt.s32.totalorder %v103, 3
    %vm125 = vcmp.lt.s32.totalorder %v103, 4
    %v126 = vsel %vm122, %v106, %v109
    %v127 = vsel %vm125, %v115, 2102212464
    %v128 = vsel %vm124, %v112, %v127
    %v129 = vsel %vm123, %v126, %v128
    %v130 = vsel %vm122, %v109, %v112
    %v131 = vsel %vm125, %v118, 920167782
    %v132 = vsel %vm124, %v115, %v131
    %v133 = vsel %vm123, %v130, %v132
    %v134 = vsel %vm122, %v112, %v115
    %v135 = vsel %vm125, %v121, 1326507024
    %v136 = vsel %vm124, %v118, %v135
    %v137 = vsel %vm123, %v134, %v136
    %v138 = vshll.u32 %v98, 8
    %v139 = vand.u32 %v138, 65535
    %v140 = vshrl.u32 %v138, 16
    %v141 = vand.u32 %v137, 65535
    %v142 = vshrl.u32 %v137, 16
    %v143 = vmul.u32 %v139, %v141
    %v144 = vmul.u32 %v139, %v142
    %v145 = vmul.u32 %v140, %v141
    %v146 = vmul.u32 %v140, %v142
    %v147 = vshll.u32 %v144, 16
    %v148 = vshrl.u32 %v144, 16
    %v149 = vshll.u32 %v145, 16
    %v150 = vshrl.u32 %v145, 16
    %vm151 = vc.u32 %v143, %v147
    %v152 = vsel %vm151, 1, 0
    %v153 = vadd.s32 %v143, %v147
    %v154 = vadd.s32 %v146, %v152
    %vm155 = vc.u32 %v153, %v149
    %v156 = vsel %vm155, 1, 0
    %v157 = vadd.s32 %v153, %v149
    %v158 = vadd.s32 %v154, %v156
    %v159 = vadd.s32 %v158, %v148
    %v160 = vadd.s32 %v159, %v150
    %v161 = vand.u32 %v138, 65535
    %v162 = vshrl.u32 %v138, 16
    %v163 = vand.u32 %v133, 65535
    %v164 = vshrl.u32 %v133, 16
    %v165 = vmul.u32 %v161, %v163
    %v166 = vmul.u32 %v161, %v164
    %v167 = vmul.u32 %v162, %v163
    %v168 = vmul.u32 %v162, %v164
    %v169 = vshll.u32 %v166, 16
    %v170 = vshrl.u32 %v166, 16
    %v171 = vshll.u32 %v167, 16
    %v172 = vshrl.u32 %v167, 16
    %vm173 = vc.u32 %v165, %v169
    %v174 = vsel %vm173, 1, 0
    %v175 = vadd.s32 %v165, %v169
    %v176 = vadd.s32 %v168, %v174
    %vm177 = vc.u32 %v175, %v171
    %v178 = vsel %vm177, 1, 0
    %v179 = vadd.s32 %v175, %v171
    %v180 = vadd.s32 %v176, %v178
    %v181 = vadd.s32 %v180, %v170
    %v182 = vadd.s32 %v181, %v172
    %v183 = vmul.u32 %v138, %v129
    %v184 = vadd.s32 %v160, %v179
    %vm185 = vc.u32 %v160, %v179
    %v186 = vadd.s32 %v182, 1
    %v187 = vsel %vm185, %v186, %v182
    %v188 = vadd.s32 %v183, %v187
    %v189 = vadd.s32 %v188, 536870912
    %v190 = vshrl.u32 %v189, 30
    %v191 = vshll.u32 %v190, 30
    %v192 = vsub.s32 %v188, %v191
    %vm193 = vcmp.lt.s32.totalorder %v192, 0
    %v194 = vsub.s32 0, %v192
    %v195 = vsel %vm193, %v194, %v192
    %v196 = vclz %v195
    %v197 = vsub.s32 %v196, 2
    %vm198 = vcmp.gt.s32.totalorder 0, %v197
    %v199 = vsel %vm198, 0, %v197
    %v200 = vsub.s32 32, %v199
    %v201 = vshll.u32 %v192, %v199
    %v202 = vshrl.u32 %v184, %v200
    %v203 = vor.u32 %v201, %v202
    %v204 = vsub.s32 4294967266, %v199
    %v205 = vadd.s32 %v204, 127
    %v206 = vshll.u32 %v205, 23
    %v207 = vor.u32 4788187, %v206
    %v208 = vand.u32 2147483647, %v207
    %v210 = vcvt.s32.f32 %v203
    %v211 = vmul.f32 %v210, %v208
    %v212 = vxor.u32 %v211, 2147483648
    %v213 = vsel %vm92, %v212, %v211
    %v214 = vsub.s32 4, %v190
    %v215 = vsel %vm92, %v214, %v190
    %v216 = vsel %vm91, %v82, %v213
    %v217 = vsel %vm91, 0, %v215
    %v218 = vmul.f32 %v216, %v216
    %v219 = vmul.f32 %v218, -0.001358992
    %v220 = vadd.f32 %v219, 0.041655596
    %v221 = vmul.f32 %v218, %v220
    %v222 = vadd.f32 %v221, -0.4999988
    %v223 = vmul.f32 %v218, %v222
    %v224 = vadd.f32 1.0, %v223
    %v225 = vmul.f32 %v216, %v216
    %v226 = vmul.f32 %v225, -0.00019511016
    %v227 = vadd.f32 %v226, 0.008332121
    %v228 = vmul.f32 %v225, %v227
    %v229 = vadd.f32 %v228, -0.16666654
    %v230 = vmul.f32 %v225, %v229
    %v231 = vadd.f32 %v230, 1.0
    %v232 = vmul.f32 %v231, %v216
    %vm233 = vweird.f32 %v82
    %v234 = vadd.s32 %v217, 3
    %v235 = vand.u32 %v234, 3
    %vm236 = vcmp.lt.s32.totalorder %v235, 2
    %vm237 = vcmp.eq.s32.totalorder %v235, 0
    %v238 = vxor.u32 %v232, 2147483648
    %v239 = vsel %vm237, %v224, %v238
    %vm240 = vcmp.eq.s32.totalorder %v235, 2
    %v241 = vxor.u32 %v224, 2147483648
    %v242 = vsel %vm240, %v241, %v232
    %v243 = vsel %vm236, %v239, %v242
    %v244 = vsel %vm233, nan, %v243
    %v245 = vand.u32 2147483647, %v83
    %vm246 = vcmp.le.f32.partialorder %v245, 0.7853982
    %vm247 = vcmp.lt.s32.totalorder %v83, 0
    %v248 = vand.u32 %v83, 2139095040
    %v249 = vshrl.u32 %v248, 23
    %v250 = vsub.s32 %v249, 127
    %v251 = vand.u32 2147483647, %v83
    %v252 = vand.u32 %v251, 8388607
    %v253 = vor.u32 %v252, 8388608
    %v254 = vsub.s32 0, %v253
    %v255 = vadd.s32 %v250, 1
    %vm256 = vcmp.gt.s32.totalorder %v255, 0
    %v257 = vsel %vm256, %v255, 0
    %v258 = vshrl.u32 %v257, 5
    %v259 = vand.u32 %v257, 31
    %v260 = vsub.s32 32, %v259
    %v261 = vshrl.u32 683565275, %v260
    %v262 = vshll.u32 683565275, %v259
    %v263 = vshrl.u32 2475754826, %v260
    %v264 = vor.u32 %v262, %v263
    %v265 = vshll.u32 2475754826, %v259
    %v266 = vshrl.u32 2131351028, %v260
    %v267 = vor.u32 %v265, %v266
    %v268 = vshll.u32 2131351028, %v259
    %v269 = vshrl.u32 2102212464, %v260
    %v270 = vor.u32 %v268, %v269
    %v271 = vshll.u32 2102212464, %v259
    %v272 = vshrl.u32 920167782, %v260
    %v273 = vor.u32 %v271, %v272
    %v274 = vshll.u32 920167782, %v259
    %v275 = vshrl.u32 1326507024, %v260
    %v276 = vor.u32 %v274, %v275
    %vm277 = vcmp.lt.s32.totalorder %v258, 1
    %vm278 = vcmp.lt.s32.totalorder %v258, 2
    %vm279 = vcmp.lt.s32.totalorder %v258, 3
    %vm280 = vcmp.lt.s32.totalorder %v258, 4
    %v281 = vsel %vm277, %v261, %v264
    %v282 = vsel %vm280, %v270, 2102212464
    %v283 = vsel %vm279, %v267, %v282
    %v284 = vsel %vm278, %v281, %v283
    %v285 = vsel %vm277, %v264, %v267
    %v286 = vsel %vm280, %v273, 920167782
    %v287 = vsel %vm279, %v270, %v286
    %v288 = vsel %vm278, %v285, %v287
    %v289 = vsel %vm277, %v267, %v270
    %v290 = vsel %vm280, %v276, 1326507024
    %v291 = vsel %vm279, %v273, %v290
    %v292 = vsel %vm278, %v289, %v291
    %v293 = vshll.u32 %v253, 8
    %v294 = vand.u32 %v293, 65535
    %v295 = vshrl.u32 %v293, 16
    %v296 = vand.u32 %v292, 65535
    %v297 = vshrl.u32 %v292, 16
    %v298 = vmul.u32 %v294, %v296
    %v299 = vmul.u32 %v294, %v297
    %v300 = vmul.u32 %v295, %v296
    %v301 = vmul.u32 %v295, %v297
    %v302 = vshll.u32 %v299, 16
    %v303 = vshrl.u32 %v299, 16
    %v304 = vshll.u32 %v300, 16
    %v305 = vshrl.u32 %v300, 16
    %vm306 = vc.u32 %v298, %v302
    %v307 = vsel %vm306, 1, 0
    %v308 = vadd.s32 %v298, %v302
    %v309 = vadd.s32 %v301, %v307
    %vm310 = vc.u32 %v308, %v304
    %v311 = vsel %vm310, 1, 0
    %v312 = vadd.s32 %v308, %v304
    %v313 = vadd.s32 %v309, %v311
    %v314 = vadd.s32 %v313, %v303
    %v315 = vadd.s32 %v314, %v305
    %v316 = vand.u32 %v293, 65535
    %v317 = vshrl.u32 %v293, 16
    %v318 = vand.u32 %v288, 65535
    %v319 = vshrl.u32 %v288, 16
    %v320 = vmul.u32 %v316, %v318
    %v321 = vmul.u32 %v316, %v319
    %v322 = vmul.u32 %v317, %v318
    %v323 = vmul.u32 %v317, %v319
    %v324 = vshll.u32 %v321, 16
    %v325 = vshrl.u32 %v321, 16
    %v326 = vshll.u32 %v322, 16
    %v327 = vshrl.u32 %v322, 16
    %vm328 = vc.u32 %v320, %v324
    %v329 = vsel %vm328, 1, 0
    %v330 = vadd.s32 %v320, %v324
    %v331 = vadd.s32 %v323, %v329
    %vm332 = vc.u32 %v330, %v326
    %v333 = vsel %vm332, 1, 0
    %v334 = vadd.s32 %v330, %v326
    %v335 = vadd.s32 %v331, %v333
    %v336 = vadd.s32 %v335, %v325
    %v337 = vadd.s32 %v336, %v327
    %v338 = vmul.u32 %v293, %v284
    %v339 = vadd.s32 %v315, %v334
    %vm340 = vc.u32 %v315, %v334
    %v341 = vadd.s32 %v337, 1
    %v342 = vsel %vm340, %v341, %v337
    %v343 = vadd.s32 %v338, %v342
    %v344 = vadd.s32 %v343, 536870912
    %v345 = vshrl.u32 %v344, 30
    %v346 = vshll.u32 %v345, 30
    %v347 = vsub.s32 %v343, %v346
    %vm348 = vcmp.lt.s32.totalorder %v347, 0
    %v349 = vsub.s32 0, %v347
    %v350 = vsel %vm348, %v349, %v347
    %v351 = vclz %v350
    %v352 = vsub.s32 %v351, 2
    %vm353 = vcmp.gt.s32.totalorder 0, %v352
    %v354 = vsel %vm353, 0, %v352
    %v355 = vsub.s32 32, %v354
    %v356 = vshll.u32 %v347, %v354
    %v357 = vshrl.u32 %v339, %v355
    %v358 = vor.u32 %v356, %v357
    %v359 = vsub.s32 4294967266, %v354
    %v360 = vadd.s32 %v359, 127
    %v361 = vshll.u32 %v360, 23
    %v362 = vor.u32 4788187, %v361
    %v363 = vand.u32 2147483647, %v362
    %v365 = vcvt.s32.f32 %v358
    %v366 = vmul.f32 %v365, %v363
    %v367 = vxor.u32 %v366, 2147483648
    %v368 = vsel %vm247, %v367, %v366
    %v369 = vsub.s32 4, %v345
    %v370 = vsel %vm247, %v369, %v345
    %v371 = vsel %vm246, %v83, %v368
    %v372 = vsel %vm246, 0, %v370
    %v373 = vmul.f32 %v371, %v371
    %v374 = vmul.f32 %v373, -0.001358992
    %v375 = vadd.f32 %v374, 0.041655596
    %v376 = vmul.f32 %v373, %v375
    %v377 = vadd.f32 %v376, -0.4999988
    %v378 = vmul.f32 %v373, %v377
    %v379 = vadd.f32 1.0, %v378
    %v380 = vmul.f32 %v371, %v371
    %v381 = vmul.f32 %v380, -0.00019511016
    %v382 = vadd.f32 %v381, 0.008332121
    %v383 = vmul.f32 %v380, %v382
    %v384 = vadd.f32 %v383, -0.16666654
    %v385 = vmul.f32 %v380, %v384
    %v386 = vadd.f32 %v385, 1.0
    %v387 = vmul.f32 %v386, %v371
    %vm388 = vweird.f32 %v83
    %v389 = vadd.s32 %v372, 3
    %v390 = vand.u32 %v389, 3
    %vm391 = vcmp.lt.s32.totalorder %v390, 2
    %vm392 = vcmp.eq.s32.totalorder %v390, 0
    %v393 = vxor.u32 %v387, 2147483648
    %v394 = vsel %vm392, %v379, %v393
    %vm395 = vcmp.eq.s32.totalorder %v390, 2
    %v396 = vxor.u32 %v379, 2147483648
    %v397 = vsel %vm395, %v396, %v387
    %v398 = vsel %vm391, %v394, %v397
    %v399 = vsel %vm388, nan, %v398
    %v400 = vand.u32 2147483647, %v84
    %vm401 = vcmp.le.f32.partialorder %v400, 0.7853982
    %vm402 = vcmp.lt.s32.totalorder %v84, 0
    %v403 = vand.u32 %v84, 2139095040
    %v404 = vshrl.u32 %v403, 23
    %v405 = vsub.s32 %v404, 127
    %v406 = vand.u32 2147483647, %v84
    %v407 = vand.u32 %v406, 8388607
    %v408 = vor.u32 %v407, 8388608
    %v409 = vsub.s32 0, %v408
    %v410 = vadd.s32 %v405, 1
    %vm411 = vcmp.gt.s32.totalorder %v410, 0
    %v412 = vsel %vm411, %v410, 0
    %v413 = vshrl.u32 %v412, 5
    %v414 = vand.u32 %v412, 31
    %v415 = vsub.s32 32, %v414
    %v416 = vshrl.u32 683565275, %v415
    %v417 = vshll.u32 683565275, %v414
    %v418 = vshrl.u32 2475754826, %v415
    %v419 = vor.u32 %v417, %v418
    %v420 = vshll.u32 2475754826, %v414
    %v421 = vshrl.u32 2131351028, %v415
    %v422 = vor.u32 %v420, %v421
    %v423 = vshll.u32 2131351028, %v414
    %v424 = vshrl.u32 2102212464, %v415
    %v425 = vor.u32 %v423, %v424
    %v426 = vshll.u32 2102212464, %v414
    %v427 = vshrl.u32 920167782, %v415
    %v428 = vor.u32 %v426, %v427
    %v429 = vshll.u32 920167782, %v414
    %v430 = vshrl.u32 1326507024, %v415
    %v431 = vor.u32 %v429, %v430
    %vm432 = vcmp.lt.s32.totalorder %v413, 1
    %vm433 = vcmp.lt.s32.totalorder %v413, 2
    %vm434 = vcmp.lt.s32.totalorder %v413, 3
    %vm435 = vcmp.lt.s32.totalorder %v413, 4
    %v436 = vsel %vm432, %v416, %v419
    %v437 = vsel %vm435, %v425, 2102212464
    %v438 = vsel %vm434, %v422, %v437
    %v439 = vsel %vm433, %v436, %v438
    %v440 = vsel %vm432, %v419, %v422
    %v441 = vsel %vm435, %v428, 920167782
    %v442 = vsel %vm434, %v425, %v441
    %v443 = vsel %vm433, %v440, %v442
    %v444 = vsel %vm432, %v422, %v425
    %v445 = vsel %vm435, %v431, 1326507024
    %v446 = vsel %vm434, %v428, %v445
    %v447 = vsel %vm433, %v444, %v446
    %v448 = vshll.u32 %v408, 8
    %v449 = vand.u32 %v448, 65535
    %v450 = vshrl.u32 %v448, 16
    %v451 = vand.u32 %v447, 65535
    %v452 = vshrl.u32 %v447, 16
    %v453 = vmul.u32 %v449, %v451
    %v454 = vmul.u32 %v449, %v452
    %v455 = vmul.u32 %v450, %v451
    %v456 = vmul.u32 %v450, %v452
    %v457 = vshll.u32 %v454, 16
    %v458 = vshrl.u32 %v454, 16
    %v459 = vshll.u32 %v455, 16
    %v460 = vshrl.u32 %v455, 16
    %vm461 = vc.u32 %v453, %v457
    %v462 = vsel %vm461, 1, 0
    %v463 = vadd.s32 %v453, %v457
    %v464 = vadd.s32 %v456, %v462
    %vm465 = vc.u32 %v463, %v459
    %v466 = vsel %vm465, 1, 0
    %v467 = vadd.s32 %v463, %v459
    %v468 = vadd.s32 %v464, %v466
    %v469 = vadd.s32 %v468, %v458
    %v470 = vadd.s32 %v469, %v460
    %v471 = vand.u32 %v448, 65535
    %v472 = vshrl.u32 %v448, 16
    %v473 = vand.u32 %v443, 65535
    %v474 = vshrl.u32 %v443, 16
    %v475 = vmul.u32 %v471, %v473
    %v476 = vmul.u32 %v471, %v474
    %v477 = vmul.u32 %v472, %v473
    %v478 = vmul.u32 %v472, %v474
    %v479 = vshll.u32 %v476, 16
    %v480 = vshrl.u32 %v476, 16
    %v481 = vshll.u32 %v477, 16
    %v482 = vshrl.u32 %v477, 16
    %vm483 = vc.u32 %v475, %v479
    %v484 = vsel %vm483, 1, 0
    %v485 = vadd.s32 %v475, %v479
    %v486 = vadd.s32 %v478, %v484
    %vm487 = vc.u32 %v485, %v481
    %v488 = vsel %vm487, 1, 0
    %v489 = vadd.s32 %v485, %v481
    %v490 = vadd.s32 %v486, %v488
    %v491 = vadd.s32 %v490, %v480
    %v492 = vadd.s32 %v491, %v482
    %v493 = vmul.u32 %v448, %v439
    %v494 = vadd.s32 %v470, %v489
    %vm495 = vc.u32 %v470, %v489
    %v496 = vadd.s32 %v492, 1
    %v497 = vsel %vm495, %v496, %v492
    %v498 = vadd.s32 %v493, %v497
    %v499 = vadd.s32 %v498, 536870912
    %v500 = vshrl.u32 %v499, 30
    %v501 = vshll.u32 %v500, 30
    %v502 = vsub.s32 %v498, %v501
    %vm503 = vcmp.lt.s32.totalorder %v502, 0
    %v504 = vsub.s32 0, %v502
    %v505 = vsel %vm503, %v504, %v502
    %v506 = vclz %v505
    %v507 = vsub.s32 %v506, 2
    %vm508 = vcmp.gt.s32.totalorder 0, %v507
    %v509 = vsel %vm508, 0, %v507
    %v510 = vsub.s32 32, %v509
    %v511 = vshll.u32 %v502, %v509
    %v512 = vshrl.u32 %v494, %v510
    %v513 = vor.u32 %v511, %v512
    %v514 = vsub.s32 4294967266, %v509
    %v515 = vadd.s32 %v514, 127
    %v516 = vshll.u32 %v515, 23
    %v517 = vor.u32 4788187, %v516
    %v518 = vand.u32 2147483647, %v517
    %v520 = vcvt.s32.f32 %v513
    %v521 = vmul.f32 %v520, %v518
    %v522 = vxor.u32 %v521, 2147483648
    %v523 = vsel %vm402, %v522, %v521
    %v524 = vsub.s32 4, %v500
    %v525 = vsel %vm402, %v524, %v500
    %v526 = vsel %vm401, %v84, %v523
    %v527 = vsel %vm401, 0, %v525
    %v528 = vmul.f32 %v526, %v526
    %v529 = vmul.f32 %v528, -0.001358992
    %v530 = vadd.f32 %v529, 0.041655596
    %v531 = vmul.f32 %v528, %v530
    %v532 = vadd.f32 %v531, -0.4999988
    %v533 = vmul.f32 %v528, %v532
    %v534 = vadd.f32 1.0, %v533
    %v535 = vmul.f32 %v526, %v526
    %v536 = vmul.f32 %v535, -0.00019511016
    %v537 = vadd.f32 %v536, 0.008332121
    %v538 = vmul.f32 %v535, %v537
    %v539 = vadd.f32 %v538, -0.16666654
    %v540 = vmul.f32 %v535, %v539
    %v541 = vadd.f32 %v540, 1.0
    %v542 = vmul.f32 %v541, %v526
    %vm543 = vweird.f32 %v84
    %v544 = vadd.s32 %v527, 3
    %v545 = vand.u32 %v544, 3
    %vm546 = vcmp.lt.s32.totalorder %v545, 2
    %vm547 = vcmp.eq.s32.totalorder %v545, 0
    %v548 = vxor.u32 %v542, 2147483648
    %v549 = vsel %vm547, %v534, %v548
    %vm550 = vcmp.eq.s32.totalorder %v545, 2
    %v551 = vxor.u32 %v534, 2147483648
    %v552 = vsel %vm550, %v551, %v542
    %v553 = vsel %vm546, %v549, %v552
    %v554 = vsel %vm543, nan, %v553
    %v555 = vand.u32 2147483647, %v85
    %vm556 = vcmp.le.f32.partialorder %v555, 0.7853982
    %vm557 = vcmp.lt.s32.totalorder %v85, 0
    %v558 = vand.u32 %v85, 2139095040
    %v559 = vshrl.u32 %v558, 23
    %v560 = vsub.s32 %v559, 127
    %v561 = vand.u32 2147483647, %v85
    %v562 = vand.u32 %v561, 8388607
    %v563 = vor.u32 %v562, 8388608
    %v564 = vsub.s32 0, %v563
    %v565 = vadd.s32 %v560, 1
    %vm566 = vcmp.gt.s32.totalorder %v565, 0
    %v567 = vsel %vm566, %v565, 0
    %v568 = vshrl.u32 %v567, 5
    %v569 = vand.u32 %v567, 31
    %v570 = vsub.s32 32, %v569
    %v571 = vshrl.u32 683565275, %v570
    %v572 = vshll.u32 683565275, %v569
    %v573 = vshrl.u32 2475754826, %v570
    %v574 = vor.u32 %v572, %v573
    %v575 = vshll.u32 2475754826, %v569
    %v576 = vshrl.u32 2131351028, %v570
    %v577 = vor.u32 %v575, %v576
    %v578 = vshll.u32 2131351028, %v569
    %v579 = vshrl.u32 2102212464, %v570
    %v580 = vor.u32 %v578, %v579
    %v581 = vshll.u32 2102212464, %v569
    %v582 = vshrl.u32 920167782, %v570
    %v583 = vor.u32 %v581, %v582
    %v584 = vshll.u32 920167782, %v569
    %v585 = vshrl.u32 1326507024, %v570
    %v586 = vor.u32 %v584, %v585
    %vm587 = vcmp.lt.s32.totalorder %v568, 1
    %vm588 = vcmp.lt.s32.totalorder %v568, 2
    %vm589 = vcmp.lt.s32.totalorder %v568, 3
    %vm590 = vcmp.lt.s32.totalorder %v568, 4
    %v591 = vsel %vm587, %v571, %v574
    %v592 = vsel %vm590, %v580, 2102212464
    %v593 = vsel %vm589, %v577, %v592
    %v594 = vsel %vm588, %v591, %v593
    %v595 = vsel %vm587, %v574, %v577
    %v596 = vsel %vm590, %v583, 920167782
    %v597 = vsel %vm589, %v580, %v596
    %v598 = vsel %vm588, %v595, %v597
    %v599 = vsel %vm587, %v577, %v580
    %v600 = vsel %vm590, %v586, 1326507024
    %v601 = vsel %vm589, %v583, %v600
    %v602 = vsel %vm588, %v599, %v601
    %v603 = vshll.u32 %v563, 8
    %v604 = vand.u32 %v603, 65535
    %v605 = vshrl.u32 %v603, 16
    %v606 = vand.u32 %v602, 65535
    %v607 = vshrl.u32 %v602, 16
    %v608 = vmul.u32 %v604, %v606
    %v609 = vmul.u32 %v604, %v607
    %v610 = vmul.u32 %v605, %v606
    %v611 = vmul.u32 %v605, %v607
    %v612 = vshll.u32 %v609, 16
    %v613 = vshrl.u32 %v609, 16
    %v614 = vshll.u32 %v610, 16
    %v615 = vshrl.u32 %v610, 16
    %vm616 = vc.u32 %v608, %v612
    %v617 = vsel %vm616, 1, 0
    %v618 = vadd.s32 %v608, %v612
    %v619 = vadd.s32 %v611, %v617
    %vm620 = vc.u32 %v618, %v614
    %v621 = vsel %vm620, 1, 0
    %v622 = vadd.s32 %v618, %v614
    %v623 = vadd.s32 %v619, %v621
    %v624 = vadd.s32 %v623, %v613
    %v625 = vadd.s32 %v624, %v615
    %v626 = vand.u32 %v603, 65535
    %v627 = vshrl.u32 %v603, 16
    %v628 = vand.u32 %v598, 65535
    %v629 = vshrl.u32 %v598, 16
    %v630 = vmul.u32 %v626, %v628
    %v631 = vmul.u32 %v626, %v629
    %v632 = vmul.u32 %v627, %v628
    %v633 = vmul.u32 %v627, %v629
    %v634 = vshll.u32 %v631, 16
    %v635 = vshrl.u32 %v631, 16
    %v636 = vshll.u32 %v632, 16
    %v637 = vshrl.u32 %v632, 16
    %vm638 = vc.u32 %v630, %v634
    %v639 = vsel %vm638, 1, 0
    %v640 = vadd.s32 %v630, %v634
    %v641 = vadd.s32 %v633, %v639
    %vm642 = vc.u32 %v640, %v636
    %v643 = vsel %vm642, 1, 0
    %v644 = vadd.s32 %v640, %v636
    %v645 = vadd.s32 %v641, %v643
    %v646 = vadd.s32 %v645, %v635
    %v647 = vadd.s32 %v646, %v637
    %v648 = vmul.u32 %v603, %v594
    %v649 = vadd.s32 %v625, %v644
    %vm650 = vc.u32 %v625, %v644
    %v651 = vadd.s32 %v647, 1
    %v652 = vsel %vm650, %v651, %v647
    %v653 = vadd.s32 %v648, %v652
    %v654 = vadd.s32 %v653, 536870912
    %v655 = vshrl.u32 %v654, 30
    %v656 = vshll.u32 %v655, 30
    %v657 = vsub.s32 %v653, %v656
    %vm658 = vcmp.lt.s32.totalorder %v657, 0
    %v659 = vsub.s32 0, %v657
    %v660 = vsel %vm658, %v659, %v657
    %v661 = vclz %v660
    %v662 = vsub.s32 %v661, 2
    %vm663 = vcmp.gt.s32.totalorder 0, %v662
    %v664 = vsel %vm663, 0, %v662
    %v665 = vsub.s32 32, %v664
    %v666 = vshll.u32 %v657, %v664
    %v667 = vshrl.u32 %v649, %v665
    %v668 = vor.u32 %v666, %v667
    %v669 = vsub.s32 4294967266, %v664
    %v670 = vadd.s32 %v669, 127
    %v671 = vshll.u32 %v670, 23
    %v672 = vor.u32 4788187, %v671
    %v673 = vand.u32 2147483647, %v672
    %v675 = vcvt.s32.f32 %v668
    %v676 = vmul.f32 %v675, %v673
    %v677 = vxor.u32 %v676, 2147483648
    %v678 = vsel %vm557, %v677, %v676
    %v679 = vsub.s32 4, %v655
    %v680 = vsel %vm557, %v679, %v655
    %v681 = vsel %vm556, %v85, %v678
    %v682 = vsel %vm556, 0, %v680
    %v683 = vmul.f32 %v681, %v681
    %v684 = vmul.f32 %v683, -0.001358992
    %v685 = vadd.f32 %v684, 0.041655596
    %v686 = vmul.f32 %v683, %v685
    %v687 = vadd.f32 %v686, -0.4999988
    %v688 = vmul.f32 %v683, %v687
    %v689 = vadd.f32 1.0, %v688
    %v690 = vmul.f32 %v681, %v681
    %v691 = vmul.f32 %v690, -0.00019511016
    %v692 = vadd.f32 %v691, 0.008332121
    %v693 = vmul.f32 %v690, %v692
    %v694 = vadd.f32 %v693, -0.16666654
    %v695 = vmul.f32 %v690, %v694
    %v696 = vadd.f32 %v695, 1.0
    %v697 = vmul.f32 %v696, %v681
    %vm698 = vweird.f32 %v85
    %v699 = vadd.s32 %v682, 3
    %v700 = vand.u32 %v699, 3
    %vm701 = vcmp.lt.s32.totalorder %v700, 2
    %vm702 = vcmp.eq.s32.totalorder %v700, 0
    %v703 = vxor.u32 %v697, 2147483648
    %v704 = vsel %vm702, %v689, %v703
    %vm705 = vcmp.eq.s32.totalorder %v700, 2
    %v706 = vxor.u32 %v689, 2147483648
    %v707 = vsel %vm705, %v706, %v697
    %v708 = vsel %vm701, %v704, %v707
    %v709 = vsel %vm698, nan, %v708
    %v710 = vand.u32 2147483647, %v86
    %vm711 = vcmp.le.f32.partialorder %v710, 0.7853982
    %vm712 = vcmp.lt.s32.totalorder %v86, 0
    %v713 = vand.u32 %v86, 2139095040
    %v714 = vshrl.u32 %v713, 23
    %v715 = vsub.s32 %v714, 127
    %v716 = vand.u32 2147483647, %v86
    %v717 = vand.u32 %v716, 8388607
    %v718 = vor.u32 %v717, 8388608
    %v719 = vsub.s32 0, %v718
    %v720 = vadd.s32 %v715, 1
    %vm721 = vcmp.gt.s32.totalorder %v720, 0
    %v722 = vsel %vm721, %v720, 0
    %v723 = vshrl.u32 %v722, 5
    %v724 = vand.u32 %v722, 31
    %v725 = vsub.s32 32, %v724
    %v726 = vshrl.u32 683565275, %v725
    %v727 = vshll.u32 683565275, %v724
    %v728 = vshrl.u32 2475754826, %v725
    %v729 = vor.u32 %v727, %v728
    %v730 = vshll.u32 2475754826, %v724
    %v731 = vshrl.u32 2131351028, %v725
    %v732 = vor.u32 %v730, %v731
    %v733 = vshll.u32 2131351028, %v724
    %v734 = vshrl.u32 2102212464, %v725
    %v735 = vor.u32 %v733, %v734
    %v736 = vshll.u32 2102212464, %v724
    %v737 = vshrl.u32 920167782, %v725
    %v738 = vor.u32 %v736, %v737
    %v739 = vshll.u32 920167782, %v724
    %v740 = vshrl.u32 1326507024, %v725
    %v741 = vor.u32 %v739, %v740
    %vm742 = vcmp.lt.s32.totalorder %v723, 1
    %vm743 = vcmp.lt.s32.totalorder %v723, 2
    %vm744 = vcmp.lt.s32.totalorder %v723, 3
    %vm745 = vcmp.lt.s32.totalorder %v723, 4
    %v746 = vsel %vm742, %v726, %v729
    %v747 = vsel %vm745, %v735, 2102212464
    %v748 = vsel %vm744, %v732, %v747
    %v749 = vsel %vm743, %v746, %v748
    %v750 = vsel %vm742, %v729, %v732
    %v751 = vsel %vm745, %v738, 920167782
    %v752 = vsel %vm744, %v735, %v751
    %v753 = vsel %vm743, %v750, %v752
    %v754 = vsel %vm742, %v732, %v735
    %v755 = vsel %vm745, %v741, 1326507024
    %v756 = vsel %vm744, %v738, %v755
    %v757 = vsel %vm743, %v754, %v756
    %v758 = vshll.u32 %v718, 8
    %v759 = vand.u32 %v758, 65535
    %v760 = vshrl.u32 %v758, 16
    %v761 = vand.u32 %v757, 65535
    %v762 = vshrl.u32 %v757, 16
    %v763 = vmul.u32 %v759, %v761
    %v764 = vmul.u32 %v759, %v762
    %v765 = vmul.u32 %v760, %v761
    %v766 = vmul.u32 %v760, %v762
    %v767 = vshll.u32 %v764, 16
    %v768 = vshrl.u32 %v764, 16
    %v769 = vshll.u32 %v765, 16
    %v770 = vshrl.u32 %v765, 16
    %vm771 = vc.u32 %v763, %v767
    %v772 = vsel %vm771, 1, 0
    %v773 = vadd.s32 %v763, %v767
    %v774 = vadd.s32 %v766, %v772
    %vm775 = vc.u32 %v773, %v769
    %v776 = vsel %vm775, 1, 0
    %v777 = vadd.s32 %v773, %v769
    %v778 = vadd.s32 %v774, %v776
    %v779 = vadd.s32 %v778, %v768
    %v780 = vadd.s32 %v779, %v770
    %v781 = vand.u32 %v758, 65535
    %v782 = vshrl.u32 %v758, 16
    %v783 = vand.u32 %v753, 65535
    %v784 = vshrl.u32 %v753, 16
    %v785 = vmul.u32 %v781, %v783
    %v786 = vmul.u32 %v781, %v784
    %v787 = vmul.u32 %v782, %v783
    %v788 = vmul.u32 %v782, %v784
    %v789 = vshll.u32 %v786, 16
    %v790 = vshrl.u32 %v786, 16
    %v791 = vshll.u32 %v787, 16
    %v792 = vshrl.u32 %v787, 16
    %vm793 = vc.u32 %v785, %v789
    %v794 = vsel %vm793, 1, 0
    %v795 = vadd.s32 %v785, %v789
    %v796 = vadd.s32 %v788, %v794
    %vm797 = vc.u32 %v795, %v791
    %v798 = vsel %vm797, 1, 0
    %v799 = vadd.s32 %v795, %v791
    %v800 = vadd.s32 %v796, %v798
    %v801 = vadd.s32 %v800, %v790
    %v802 = vadd.s32 %v801, %v792
    %v803 = vmul.u32 %v758, %v749
    %v804 = vadd.s32 %v780, %v799
    %vm805 = vc.u32 %v780, %v799
    %v806 = vadd.s32 %v802, 1
    %v807 = vsel %vm805, %v806, %v802
    %v808 = vadd.s32 %v803, %v807
    %v809 = vadd.s32 %v808, 536870912
    %v810 = vshrl.u32 %v809, 30
    %v811 = vshll.u32 %v810, 30
    %v812 = vsub.s32 %v808, %v811
    %vm813 = vcmp.lt.s32.totalorder %v812, 0
    %v814 = vsub.s32 0, %v812
    %v815 = vsel %vm813, %v814, %v812
    %v816 = vclz %v815
    %v817 = vsub.s32 %v816, 2
    %vm818 = vcmp.gt.s32.totalorder 0, %v817
    %v819 = vsel %vm818, 0, %v817
    %v820 = vsub.s32 32, %v819
    %v821 = vshll.u32 %v812, %v819
    %v822 = vshrl.u32 %v804, %v820
    %v823 = vor.u32 %v821, %v822
    %v824 = vsub.s32 4294967266, %v819
    %v825 = vadd.s32 %v824, 127
    %v826 = vshll.u32 %v825, 23
    %v827 = vor.u32 4788187, %v826
    %v828 = vand.u32 2147483647, %v827
    %v830 = vcvt.s32.f32 %v823
    %v831 = vmul.f32 %v830, %v828
    %v832 = vxor.u32 %v831, 2147483648
    %v833 = vsel %vm712, %v832, %v831
    %v834 = vsub.s32 4, %v810
    %v835 = vsel %vm712, %v834, %v810
    %v836 = vsel %vm711, %v86, %v833
    %v837 = vsel %vm711, 0, %v835
    %v838 = vmul.f32 %v836, %v836
    %v839 = vmul.f32 %v838, -0.001358992
    %v840 = vadd.f32 %v839, 0.041655596
    %v841 = vmul.f32 %v838, %v840
    %v842 = vadd.f32 %v841, -0.4999988
    %v843 = vmul.f32 %v838, %v842
    %v844 = vadd.f32 1.0, %v843
    %v845 = vmul.f32 %v836, %v836
    %v846 = vmul.f32 %v845, -0.00019511016
    %v847 = vadd.f32 %v846, 0.008332121
    %v848 = vmul.f32 %v845, %v847
    %v849 = vadd.f32 %v848, -0.16666654
    %v850 = vmul.f32 %v845, %v849
    %v851 = vadd.f32 %v850, 1.0
    %v852 = vmul.f32 %v851, %v836
    %vm853 = vweird.f32 %v86
    %v854 = vadd.s32 %v837, 3
    %v855 = vand.u32 %v854, 3
    %vm856 = vcmp.lt.s32.totalorder %v855, 2
    %vm857 = vcmp.eq.s32.totalorder %v855, 0
    %v858 = vxor.u32 %v852, 2147483648
    %v859 = vsel %vm857, %v844, %v858
    %vm860 = vcmp.eq.s32.totalorder %v855, 2
    %v861 = vxor.u32 %v844, 2147483648
    %v862 = vsel %vm860, %v861, %v852
    %v863 = vsel %vm856, %v859, %v862
    %v864 = vsel %vm853, nan, %v863
    %v865 = vand.u32 2147483647, %v87
    %vm866 = vcmp.le.f32.partialorder %v865, 0.7853982
    %vm867 = vcmp.lt.s32.totalorder %v87, 0
    %v868 = vand.u32 %v87, 2139095040
    %v869 = vshrl.u32 %v868, 23
    %v870 = vsub.s32 %v869, 127
    %v871 = vand.u32 2147483647, %v87
    %v872 = vand.u32 %v871, 8388607
    %v873 = vor.u32 %v872, 8388608
    %v874 = vsub.s32 0, %v873
    %v875 = vadd.s32 %v870, 1
    %vm876 = vcmp.gt.s32.totalorder %v875, 0
    %v877 = vsel %vm876, %v875, 0
    %v878 = vshrl.u32 %v877, 5
    %v879 = vand.u32 %v877, 31
    %v880 = vsub.s32 32, %v879
    %v881 = vshrl.u32 683565275, %v880
    %v882 = vshll.u32 683565275, %v879
    %v883 = vshrl.u32 2475754826, %v880
    %v884 = vor.u32 %v882, %v883
    %v885 = vshll.u32 2475754826, %v879
    %v886 = vshrl.u32 2131351028, %v880
    %v887 = vor.u32 %v885, %v886
    %v888 = vshll.u32 2131351028, %v879
    %v889 = vshrl.u32 2102212464, %v880
    %v890 = vor.u32 %v888, %v889
    %v891 = vshll.u32 2102212464, %v879
    %v892 = vshrl.u32 920167782, %v880
    %v893 = vor.u32 %v891, %v892
    %v894 = vshll.u32 920167782, %v879
    %v895 = vshrl.u32 1326507024, %v880
    %v896 = vor.u32 %v894, %v895
    %vm897 = vcmp.lt.s32.totalorder %v878, 1
    %vm898 = vcmp.lt.s32.totalorder %v878, 2
    %vm899 = vcmp.lt.s32.totalorder %v878, 3
    %vm900 = vcmp.lt.s32.totalorder %v878, 4
    %v901 = vsel %vm897, %v881, %v884
    %v902 = vsel %vm900, %v890, 2102212464
    %v903 = vsel %vm899, %v887, %v902
    %v904 = vsel %vm898, %v901, %v903
    %v905 = vsel %vm897, %v884, %v887
    %v906 = vsel %vm900, %v893, 920167782
    %v907 = vsel %vm899, %v890, %v906
    %v908 = vsel %vm898, %v905, %v907
    %v909 = vsel %vm897, %v887, %v890
    %v910 = vsel %vm900, %v896, 1326507024
    %v911 = vsel %vm899, %v893, %v910
    %v912 = vsel %vm898, %v909, %v911
    %v913 = vshll.u32 %v873, 8
    %v914 = vand.u32 %v913, 65535
    %v915 = vshrl.u32 %v913, 16
    %v916 = vand.u32 %v912, 65535
    %v917 = vshrl.u32 %v912, 16
    %v918 = vmul.u32 %v914, %v916
    %v919 = vmul.u32 %v914, %v917
    %v920 = vmul.u32 %v915, %v916
    %v921 = vmul.u32 %v915, %v917
    %v922 = vshll.u32 %v919, 16
    %v923 = vshrl.u32 %v919, 16
    %v924 = vshll.u32 %v920, 16
    %v925 = vshrl.u32 %v920, 16
    %vm926 = vc.u32 %v918, %v922
    %v927 = vsel %vm926, 1, 0
    %v928 = vadd.s32 %v918, %v922
    %v929 = vadd.s32 %v921, %v927
    %vm930 = vc.u32 %v928, %v924
    %v931 = vsel %vm930, 1, 0
    %v932 = vadd.s32 %v928, %v924
    %v933 = vadd.s32 %v929, %v931
    %v934 = vadd.s32 %v933, %v923
    %v935 = vadd.s32 %v934, %v925
    %v936 = vand.u32 %v913, 65535
    %v937 = vshrl.u32 %v913, 16
    %v938 = vand.u32 %v908, 65535
    %v939 = vshrl.u32 %v908, 16
    %v940 = vmul.u32 %v936, %v938
    %v941 = vmul.u32 %v936, %v939
    %v942 = vmul.u32 %v937, %v938
    %v943 = vmul.u32 %v937, %v939
    %v944 = vshll.u32 %v941, 16
    %v945 = vshrl.u32 %v941, 16
    %v946 = vshll.u32 %v942, 16
    %v947 = vshrl.u32 %v942, 16
    %vm948 = vc.u32 %v940, %v944
    %v949 = vsel %vm948, 1, 0
    %v950 = vadd.s32 %v940, %v944
    %v951 = vadd.s32 %v943, %v949
    %vm952 = vc.u32 %v950, %v946
    %v953 = vsel %vm952, 1, 0
    %v954 = vadd.s32 %v950, %v946
    %v955 = vadd.s32 %v951, %v953
    %v956 = vadd.s32 %v955, %v945
    %v957 = vadd.s32 %v956, %v947
    %v958 = vmul.u32 %v913, %v904
    %v959 = vadd.s32 %v935, %v954
    %vm960 = vc.u32 %v935, %v954
    %v961 = vadd.s32 %v957, 1
    %v962 = vsel %vm960, %v961, %v957
    %v963 = vadd.s32 %v958, %v962
    %v964 = vadd.s32 %v963, 536870912
    %v965 = vshrl.u32 %v964, 30
    %v966 = vshll.u32 %v965, 30
    %v967 = vsub.s32 %v963, %v966
    %vm968 = vcmp.lt.s32.totalorder %v967, 0
    %v969 = vsub.s32 0, %v967
    %v970 = vsel %vm968, %v969, %v967
    %v971 = vclz %v970
    %v972 = vsub.s32 %v971, 2
    %vm973 = vcmp.gt.s32.totalorder 0, %v972
    %v974 = vsel %vm973, 0, %v972
    %v975 = vsub.s32 32, %v974
    %v976 = vshll.u32 %v967, %v974
    %v977 = vshrl.u32 %v959, %v975
    %v978 = vor.u32 %v976, %v977
    %v979 = vsub.s32 4294967266, %v974
    %v980 = vadd.s32 %v979, 127
    %v981 = vshll.u32 %v980, 23
    %v982 = vor.u32 4788187, %v981
    %v983 = vand.u32 2147483647, %v982
    %v985 = vcvt.s32.f32 %v978
    %v986 = vmul.f32 %v985, %v983
    %v987 = vxor.u32 %v986, 2147483648
    %v988 = vsel %vm867, %v987, %v986
    %v989 = vsub.s32 4, %v965
    %v990 = vsel %vm867, %v989, %v965
    %v991 = vsel %vm866, %v87, %v988
    %v992 = vsel %vm866, 0, %v990
    %v993 = vmul.f32 %v991, %v991
    %v994 = vmul.f32 %v993, -0.001358992
    %v995 = vadd.f32 %v994, 0.041655596
    %v996 = vmul.f32 %v993, %v995
    %v997 = vadd.f32 %v996, -0.4999988
    %v998 = vmul.f32 %v993, %v997
    %v999 = vadd.f32 1.0, %v998
    %v1000 = vmul.f32 %v991, %v991
    %v1001 = vmul.f32 %v1000, -0.00019511016
    %v1002 = vadd.f32 %v1001, 0.008332121
    %v1003 = vmul.f32 %v1000, %v1002
    %v1004 = vadd.f32 %v1003, -0.16666654
    %v1005 = vmul.f32 %v1000, %v1004
    %v1006 = vadd.f32 %v1005, 1.0
    %v1007 = vmul.f32 %v1006, %v991
    %vm1008 = vweird.f32 %v87
    %v1009 = vadd.s32 %v992, 3
    %v1010 = vand.u32 %v1009, 3
    %vm1011 = vcmp.lt.s32.totalorder %v1010, 2
    %vm1012 = vcmp.eq.s32.totalorder %v1010, 0
    %v1013 = vxor.u32 %v1007, 2147483648
    %v1014 = vsel %vm1012, %v999, %v1013
    %vm1015 = vcmp.eq.s32.totalorder %v1010, 2
    %v1016 = vxor.u32 %v999, 2147483648
    %v1017 = vsel %vm1015, %v1016, %v1007
    %v1018 = vsel %vm1011, %v1014, %v1017
    %v1019 = vsel %vm1008, nan, %v1018
    %v1020 = vand.u32 2147483647, %v88
    %vm1021 = vcmp.le.f32.partialorder %v1020, 0.7853982
    %vm1022 = vcmp.lt.s32.totalorder %v88, 0
    %v1023 = vand.u32 %v88, 2139095040
    %v1024 = vshrl.u32 %v1023, 23
    %v1025 = vsub.s32 %v1024, 127
    %v1026 = vand.u32 2147483647, %v88
    %v1027 = vand.u32 %v1026, 8388607
    %v1028 = vor.u32 %v1027, 8388608
    %v1029 = vsub.s32 0, %v1028
    %v1030 = vadd.s32 %v1025, 1
    %vm1031 = vcmp.gt.s32.totalorder %v1030, 0
    %v1032 = vsel %vm1031, %v1030, 0
    %v1033 = vshrl.u32 %v1032, 5
    %v1034 = vand.u32 %v1032, 31
    %v1035 = vsub.s32 32, %v1034
    %v1036 = vshrl.u32 683565275, %v1035
    %v1037 = vshll.u32 683565275, %v1034
    %v1038 = vshrl.u32 2475754826, %v1035
    %v1039 = vor.u32 %v1037, %v1038
    %v1040 = vshll.u32 2475754826, %v1034
    %v1041 = vshrl.u32 2131351028, %v1035
    %v1042 = vor.u32 %v1040, %v1041
    %v1043 = vshll.u32 2131351028, %v1034
    %v1044 = vshrl.u32 2102212464, %v1035
    %v1045 = vor.u32 %v1043, %v1044
    %v1046 = vshll.u32 2102212464, %v1034
    %v1047 = vshrl.u32 920167782, %v1035
    %v1048 = vor.u32 %v1046, %v1047
    %v1049 = vshll.u32 920167782, %v1034
    %v1050 = vshrl.u32 1326507024, %v1035
    %v1051 = vor.u32 %v1049, %v1050
    %vm1052 = vcmp.lt.s32.totalorder %v1033, 1
    %vm1053 = vcmp.lt.s32.totalorder %v1033, 2
    %vm1054 = vcmp.lt.s32.totalorder %v1033, 3
    %vm1055 = vcmp.lt.s32.totalorder %v1033, 4
    %v1056 = vsel %vm1052, %v1036, %v1039
    %v1057 = vsel %vm1055, %v1045, 2102212464
    %v1058 = vsel %vm1054, %v1042, %v1057
    %v1059 = vsel %vm1053, %v1056, %v1058
    %v1060 = vsel %vm1052, %v1039, %v1042
    %v1061 = vsel %vm1055, %v1048, 920167782
    %v1062 = vsel %vm1054, %v1045, %v1061
    %v1063 = vsel %vm1053, %v1060, %v1062
    %v1064 = vsel %vm1052, %v1042, %v1045
    %v1065 = vsel %vm1055, %v1051, 1326507024
    %v1066 = vsel %vm1054, %v1048, %v1065
    %v1067 = vsel %vm1053, %v1064, %v1066
    %v1068 = vshll.u32 %v1028, 8
    %v1069 = vand.u32 %v1068, 65535
    %v1070 = vshrl.u32 %v1068, 16
    %v1071 = vand.u32 %v1067, 65535
    %v1072 = vshrl.u32 %v1067, 16
    %v1073 = vmul.u32 %v1069, %v1071
    %v1074 = vmul.u32 %v1069, %v1072
    %v1075 = vmul.u32 %v1070, %v1071
    %v1076 = vmul.u32 %v1070, %v1072
    %v1077 = vshll.u32 %v1074, 16
    %v1078 = vshrl.u32 %v1074, 16
    %v1079 = vshll.u32 %v1075, 16
    %v1080 = vshrl.u32 %v1075, 16
    %vm1081 = vc.u32 %v1073, %v1077
    %v1082 = vsel %vm1081, 1, 0
    %v1083 = vadd.s32 %v1073, %v1077
    %v1084 = vadd.s32 %v1076, %v1082
    %vm1085 = vc.u32 %v1083, %v1079
    %v1086 = vsel %vm1085, 1, 0
    %v1087 = vadd.s32 %v1083, %v1079
    %v1088 = vadd.s32 %v1084, %v1086
    %v1089 = vadd.s32 %v1088, %v1078
    %v1090 = vadd.s32 %v1089, %v1080
    %v1091 = vand.u32 %v1068, 65535
    %v1092 = vshrl.u32 %v1068, 16
    %v1093 = vand.u32 %v1063, 65535
    %v1094 = vshrl.u32 %v1063, 16
    %v1095 = vmul.u32 %v1091, %v1093
    %v1096 = vmul.u32 %v1091, %v1094
    %v1097 = vmul.u32 %v1092, %v1093
    %v1098 = vmul.u32 %v1092, %v1094
    %v1099 = vshll.u32 %v1096, 16
    %v1100 = vshrl.u32 %v1096, 16
    %v1101 = vshll.u32 %v1097, 16
    %v1102 = vshrl.u32 %v1097, 16
    %vm1103 = vc.u32 %v1095, %v1099
    %v1104 = vsel %vm1103, 1, 0
    %v1105 = vadd.s32 %v1095, %v1099
    %v1106 = vadd.s32 %v1098, %v1104
    %vm1107 = vc.u32 %v1105, %v1101
    %v1108 = vsel %vm1107, 1, 0
    %v1109 = vadd.s32 %v1105, %v1101
    %v1110 = vadd.s32 %v1106, %v1108
    %v1111 = vadd.s32 %v1110, %v1100
    %v1112 = vadd.s32 %v1111, %v1102
    %v1113 = vmul.u32 %v1068, %v1059
    %v1114 = vadd.s32 %v1090, %v1109
    %vm1115 = vc.u32 %v1090, %v1109
    %v1116 = vadd.s32 %v1112, 1
    %v1117 = vsel %vm1115, %v1116, %v1112
    %v1118 = vadd.s32 %v1113, %v1117
    %v1119 = vadd.s32 %v1118, 536870912
    %v1120 = vshrl.u32 %v1119, 30
    %v1121 = vshll.u32 %v1120, 30
    %v1122 = vsub.s32 %v1118, %v1121
    %vm1123 = vcmp.lt.s32.totalorder %v1122, 0
    %v1124 = vsub.s32 0, %v1122
    %v1125 = vsel %vm1123, %v1124, %v1122
    %v1126 = vclz %v1125
    %v1127 = vsub.s32 %v1126, 2
    %vm1128 = vcmp.gt.s32.totalorder 0, %v1127
    %v1129 = vsel %vm1128, 0, %v1127
    %v1130 = vsub.s32 32, %v1129
    %v1131 = vshll.u32 %v1122, %v1129
    %v1132 = vshrl.u32 %v1114, %v1130
    %v1133 = vor.u32 %v1131, %v1132
    %v1134 = vsub.s32 4294967266, %v1129
    %v1135 = vadd.s32 %v1134, 127
    %v1136 = vshll.u32 %v1135, 23
    %v1137 = vor.u32 4788187, %v1136
    %v1138 = vand.u32 2147483647, %v1137
    %v1140 = vcvt.s32.f32 %v1133
    %v1141 = vmul.f32 %v1140, %v1138
    %v1142 = vxor.u32 %v1141, 2147483648
    %v1143 = vsel %vm1022, %v1142, %v1141
    %v1144 = vsub.s32 4, %v1120
    %v1145 = vsel %vm1022, %v1144, %v1120
    %v1146 = vsel %vm1021, %v88, %v1143
    %v1147 = vsel %vm1021, 0, %v1145
    %v1148 = vmul.f32 %v1146, %v1146
    %v1149 = vmul.f32 %v1148, -0.001358992
    %v1150 = vadd.f32 %v1149, 0.041655596
    %v1151 = vmul.f32 %v1148, %v1150
    %v1152 = vadd.f32 %v1151, -0.4999988
    %v1153 = vmul.f32 %v1148, %v1152
    %v1154 = vadd.f32 1.0, %v1153
    %v1155 = vmul.f32 %v1146, %v1146
    %v1156 = vmul.f32 %v1155, -0.00019511016
    %v1157 = vadd.f32 %v1156, 0.008332121
    %v1158 = vmul.f32 %v1155, %v1157
    %v1159 = vadd.f32 %v1158, -0.16666654
    %v1160 = vmul.f32 %v1155, %v1159
    %v1161 = vadd.f32 %v1160, 1.0
    %v1162 = vmul.f32 %v1161, %v1146
    %vm1163 = vweird.f32 %v88
    %v1164 = vadd.s32 %v1147, 3
    %v1165 = vand.u32 %v1164, 3
    %vm1166 = vcmp.lt.s32.totalorder %v1165, 2
    %vm1167 = vcmp.eq.s32.totalorder %v1165, 0
    %v1168 = vxor.u32 %v1162, 2147483648
    %v1169 = vsel %vm1167, %v1154, %v1168
    %vm1170 = vcmp.eq.s32.totalorder %v1165, 2
    %v1171 = vxor.u32 %v1154, 2147483648
    %v1172 = vsel %vm1170, %v1171, %v1162
    %v1173 = vsel %vm1166, %v1169, %v1172
    %v1174 = vsel %vm1163, nan, %v1173
    %v1175 = vand.u32 2147483647, %v89
    %vm1176 = vcmp.le.f32.partialorder %v1175, 0.7853982
    %vm1177 = vcmp.lt.s32.totalorder %v89, 0
    %v1178 = vand.u32 %v89, 2139095040
    %v1179 = vshrl.u32 %v1178, 23
    %v1180 = vsub.s32 %v1179, 127
    %v1181 = vand.u32 2147483647, %v89
    %v1182 = vand.u32 %v1181, 8388607
    %v1183 = vor.u32 %v1182, 8388608
    %v1184 = vsub.s32 0, %v1183
    %v1185 = vadd.s32 %v1180, 1
    %vm1186 = vcmp.gt.s32.totalorder %v1185, 0
    %v1187 = vsel %vm1186, %v1185, 0
    %v1188 = vshrl.u32 %v1187, 5
    %v1189 = vand.u32 %v1187, 31
    %v1190 = vsub.s32 32, %v1189
    %v1191 = vshrl.u32 683565275, %v1190
    %v1192 = vshll.u32 683565275, %v1189
    %v1193 = vshrl.u32 2475754826, %v1190
    %v1194 = vor.u32 %v1192, %v1193
    %v1195 = vshll.u32 2475754826, %v1189
    %v1196 = vshrl.u32 2131351028, %v1190
    %v1197 = vor.u32 %v1195, %v1196
    %v1198 = vshll.u32 2131351028, %v1189
    %v1199 = vshrl.u32 2102212464, %v1190
    %v1200 = vor.u32 %v1198, %v1199
    %v1201 = vshll.u32 2102212464, %v1189
    %v1202 = vshrl.u32 920167782, %v1190
    %v1203 = vor.u32 %v1201, %v1202
    %v1204 = vshll.u32 920167782, %v1189
    %v1205 = vshrl.u32 1326507024, %v1190
    %v1206 = vor.u32 %v1204, %v1205
    %vm1207 = vcmp.lt.s32.totalorder %v1188, 1
    %vm1208 = vcmp.lt.s32.totalorder %v1188, 2
    %vm1209 = vcmp.lt.s32.totalorder %v1188, 3
    %vm1210 = vcmp.lt.s32.totalorder %v1188, 4
    %v1211 = vsel %vm1207, %v1191, %v1194
    %v1212 = vsel %vm1210, %v1200, 2102212464
    %v1213 = vsel %vm1209, %v1197, %v1212
    %v1214 = vsel %vm1208, %v1211, %v1213
    %v1215 = vsel %vm1207, %v1194, %v1197
    %v1216 = vsel %vm1210, %v1203, 920167782
    %v1217 = vsel %vm1209, %v1200, %v1216
    %v1218 = vsel %vm1208, %v1215, %v1217
    %v1219 = vsel %vm1207, %v1197, %v1200
    %v1220 = vsel %vm1210, %v1206, 1326507024
    %v1221 = vsel %vm1209, %v1203, %v1220
    %v1222 = vsel %vm1208, %v1219, %v1221
    %v1223 = vshll.u32 %v1183, 8
    %v1224 = vand.u32 %v1223, 65535
    %v1225 = vshrl.u32 %v1223, 16
    %v1226 = vand.u32 %v1222, 65535
    %v1227 = vshrl.u32 %v1222, 16
    %v1228 = vmul.u32 %v1224, %v1226
    %v1229 = vmul.u32 %v1224, %v1227
    %v1230 = vmul.u32 %v1225, %v1226
    %v1231 = vmul.u32 %v1225, %v1227
    %v1232 = vshll.u32 %v1229, 16
    %v1233 = vshrl.u32 %v1229, 16
    %v1234 = vshll.u32 %v1230, 16
    %v1235 = vshrl.u32 %v1230, 16
    %vm1236 = vc.u32 %v1228, %v1232
    %v1237 = vsel %vm1236, 1, 0
    %v1238 = vadd.s32 %v1228, %v1232
    %v1239 = vadd.s32 %v1231, %v1237
    %vm1240 = vc.u32 %v1238, %v1234
    %v1241 = vsel %vm1240, 1, 0
    %v1242 = vadd.s32 %v1238, %v1234
    %v1243 = vadd.s32 %v1239, %v1241
    %v1244 = vadd.s32 %v1243, %v1233
    %v1245 = vadd.s32 %v1244, %v1235
    %v1246 = vand.u32 %v1223, 65535
    %v1247 = vshrl.u32 %v1223, 16
    %v1248 = vand.u32 %v1218, 65535
    %v1249 = vshrl.u32 %v1218, 16
    %v1250 = vmul.u32 %v1246, %v1248
    %v1251 = vmul.u32 %v1246, %v1249
    %v1252 = vmul.u32 %v1247, %v1248
    %v1253 = vmul.u32 %v1247, %v1249
    %v1254 = vshll.u32 %v1251, 16
    %v1255 = vshrl.u32 %v1251, 16
    %v1256 = vshll.u32 %v1252, 16
    %v1257 = vshrl.u32 %v1252, 16
    %vm1258 = vc.u32 %v1250, %v1254
    %v1259 = vsel %vm1258, 1, 0
    %v1260 = vadd.s32 %v1250, %v1254
    %v1261 = vadd.s32 %v1253, %v1259
    %vm1262 = vc.u32 %v1260, %v1256
    %v1263 = vsel %vm1262, 1, 0
    %v1264 = vadd.s32 %v1260, %v1256
    %v1265 = vadd.s32 %v1261, %v1263
    %v1266 = vadd.s32 %v1265, %v1255
    %v1267 = vadd.s32 %v1266, %v1257
    %v1268 = vmul.u32 %v1223, %v1214
    %v1269 = vadd.s32 %v1245, %v1264
    %vm1270 = vc.u32 %v1245, %v1264
    %v1271 = vadd.s32 %v1267, 1
    %v1272 = vsel %vm1270, %v1271, %v1267
    %v1273 = vadd.s32 %v1268, %v1272
    %v1274 = vadd.s32 %v1273, 536870912
    %v1275 = vshrl.u32 %v1274, 30
    %v1276 = vshll.u32 %v1275, 30
    %v1277 = vsub.s32 %v1273, %v1276
    %vm1278 = vcmp.lt.s32.totalorder %v1277, 0
    %v1279 = vsub.s32 0, %v1277
    %v1280 = vsel %vm1278, %v1279, %v1277
    %v1281 = vclz %v1280
    %v1282 = vsub.s32 %v1281, 2
    %vm1283 = vcmp.gt.s32.totalorder 0, %v1282
    %v1284 = vsel %vm1283, 0, %v1282
    %v1285 = vsub.s32 32, %v1284
    %v1286 = vshll.u32 %v1277, %v1284
    %v1287 = vshrl.u32 %v1269, %v1285
    %v1288 = vor.u32 %v1286, %v1287
    %v1289 = vsub.s32 4294967266, %v1284
    %v1290 = vadd.s32 %v1289, 127
    %v1291 = vshll.u32 %v1290, 23
    %v1292 = vor.u32 4788187, %v1291
    %v1293 = vand.u32 2147483647, %v1292
    %v1295 = vcvt.s32.f32 %v1288
    %v1296 = vmul.f32 %v1295, %v1293
    %v1297 = vxor.u32 %v1296, 2147483648
    %v1298 = vsel %vm1177, %v1297, %v1296
    %v1299 = vsub.s32 4, %v1275
    %v1300 = vsel %vm1177, %v1299, %v1275
    %v1301 = vsel %vm1176, %v89, %v1298
    %v1302 = vsel %vm1176, 0, %v1300
    %v1303 = vmul.f32 %v1301, %v1301
    %v1304 = vmul.f32 %v1303, -0.001358992
    %v1305 = vadd.f32 %v1304, 0.041655596
    %v1306 = vmul.f32 %v1303, %v1305
    %v1307 = vadd.f32 %v1306, -0.4999988
    %v1308 = vmul.f32 %v1303, %v1307
    %v1309 = vadd.f32 1.0, %v1308
    %v1310 = vmul.f32 %v1301, %v1301
    %v1311 = vmul.f32 %v1310, -0.00019511016
    %v1312 = vadd.f32 %v1311, 0.008332121
    %v1313 = vmul.f32 %v1310, %v1312
    %v1314 = vadd.f32 %v1313, -0.16666654
    %v1315 = vmul.f32 %v1310, %v1314
    %v1316 = vadd.f32 %v1315, 1.0
    %v1317 = vmul.f32 %v1316, %v1301
    %vm1318 = vweird.f32 %v89
    %v1319 = vadd.s32 %v1302, 3
    %v1320 = vand.u32 %v1319, 3
    %vm1321 = vcmp.lt.s32.totalorder %v1320, 2
    %vm1322 = vcmp.eq.s32.totalorder %v1320, 0
    %v1323 = vxor.u32 %v1317, 2147483648
    %v1324 = vsel %vm1322, %v1309, %v1323
    %vm1325 = vcmp.eq.s32.totalorder %v1320, 2
    %v1326 = vxor.u32 %v1309, 2147483648
    %v1327 = vsel %vm1325, %v1326, %v1317
    %v1328 = vsel %vm1321, %v1324, %v1327
    %v1329 = vsel %vm1318, nan, %v1328
    %vm1330 = vcmask 261120
    %1331 = vst.msk [vmem:[%s2] sm:$0xff] %vm1330, %v244
    %1332 = vst.msk [vmem:[%s2 + $0x8] sm:$0xff] %vm1330, %v399
    %1333 = vst.msk [vmem:[%s2 + $0x10] sm:$0xff] %vm1330, %v554
    %1334 = vst.msk [vmem:[%s2 + $0x18] sm:$0xff] %vm1330, %v709
    %1335 = vst.msk [vmem:[%s2 + $0x20] sm:$0xff] %vm1330, %v864
    %1336 = vst.msk [vmem:[%s2 + $0x28] sm:$0xff] %vm1330, %v1019
    %1337 = vst.msk [vmem:[%s2 + $0x30] sm:$0xff] %vm1330, %v1174
    %1338 = vst.msk [vmem:[%s2 + $0x38] sm:$0xff] %vm1330, %v1329
    // Predicated region
    $region18: #{tpu_custom_call.1} parent=1 // pred_check
      _
    $region19: #{tpu_custom_call.1} parent=1 // pred_check_branch
      %1340 = sbr.rel (0) target = $region21
    $region20: #{tpu_custom_call.1} parent=1 // pred_region
      _
    $region21: #{tpu_custom_call.1} parent=1 // pred_fallthru
      _
    // Predicated region
    $region22: #{tpu_custom_call.1} parent=1 // pred_check
      _
    $region23: #{tpu_custom_call.1} parent=1 // pred_check_branch
      %1342 = sbr.rel (0) target = $region25
    $region24: #{tpu_custom_call.1} parent=1 // pred_region
      _
    $region25: #{tpu_custom_call.1} parent=1 // pred_fallthru
      _
    %1343 = vsyncpa [#allocation3], 1
    %1344 = vsyncpa [#allocation5], 1

</llo_original>
